<compile_context>
chip_gen: v5e
topology: v5e:2x2
jax: 0.10.0
libtpu: 0.0.40
codegen_flags: <defaults>
</compile_context>

<pallas_src>
import jax
import jax.numpy as jnp
from jax.experimental import pallas as pl
from jax.experimental.pallas import tpu as pltpu


def _round_up(a, b):
    return -(-a // b) * b


def _vmem_capacity_bytes():
    """Physical VMEM of the local chip; conservative fallback (v7x per-core)."""
    try:
        info = pltpu.get_tpu_info()
        cap = int(getattr(info, "vmem_capacity_bytes", 0))
        if cap > 0:
            return cap
    except Exception:
        pass
    return 64 * 1024 * 1024


_VMEM_CAP = _vmem_capacity_bytes()
# Scoped-VMEM limit handed to Mosaic: ~70% of physical, capped at 96 MiB
# (v5e/v6e ~90 MiB, v7x ~45 MiB).  Tile budget is ~65% of that limit so the
# double-buffered blocks always fit with headroom.
_VMEM_LIMIT = min(int(0.70 * _VMEM_CAP), 96 * 1024 * 1024)
_TILE_BUDGET = int(0.65 * _VMEM_LIMIT)

_MIN_GRID_STEPS = 4   # keep prefetch pipeline fed + v7x megacore split
_MAX_ROW_TILE = 2048  # DMA efficiency plateaus well before this


def transition_kernel(xe_ref, xo_ref, scale_ref, shift_ref, w_ref, o_ref):
    """One row-tile of pooled output pixels.

    xe_ref / xo_ref : (tm, 2C) bf16 -- even / odd rows of each 2x2 pool window;
                      lanes pack (w-parity, channel).
    scale / shift   : (1, 2C) f32   -- fused BN affine per (w-parity, channel).
    w_ref           : (2C, CoutP) bf16 -- 1x1-conv weight, row-duplicated so the
                      matmul also sums the w-pair; 1/4 pool average pre-folded.
    o_ref           : (tm, CoutP) f32.
    """
    s = scale_ref[...]
    t = shift_ref[...]
    # BN affine + ReLU in f32 on the VPU, then sum the h-pair of the window.
    xe = xe_ref[...].astype(jnp.float32)
    xo = xo_ref[...].astype(jnp.float32)
    zh = jnp.maximum(xe * s + t, 0.0) + jnp.maximum(xo * s + t, 0.0)
    # bf16 operands into the MXU, f32 accumulation.
    o_ref[...] = jnp.dot(
        zh.astype(jnp.bfloat16), w_ref[...], preferred_element_type=jnp.float32
    ).astype(o_ref.dtype)


def _pick_row_tile(M, C2, CoutP):
    """Row tile (multiple of 8) sized against the VMEM budget, capped so the
    single grid axis keeps >= _MIN_GRID_STEPS steps."""
    const_b = 2 * C2 * CoutP * 2                # weight, double-buffered, bf16
    const_b += 2 * 2 * 8 * max(C2, 128) * 4     # scale/shift tiles (padded)
    per_row = 2 * 2 * C2 * 2 + 2 * CoutP * 4    # xe+xo (bf16, x2 buf) + out (f32, x2 buf)
    tm = (_TILE_BUDGET - const_b) // per_row
    tm = max(8, (tm // 8) * 8)
    tm = min(tm, _MAX_ROW_TILE)
    steps_cap = _round_up(-(-M // _MIN_GRID_STEPS), 8)
    return max(8, min(tm, steps_cap))


def transition_forward(x_nchw, gamma, beta, conv_w, eps=1e-5):
    N, C, H, W = x_nchw.shape
    Cout = conv_w.shape[0]
    assert H % 2 == 0 and W % 2 == 0
    Hh, Wh = H // 2, W // 2
    M = N * Hh * Wh                 # pooled output pixels
    C2 = 2 * C                      # lanes pack (w-parity, channel)
    CoutP = _round_up(Cout, 128)    # lane-dense (unmasked) output stores

    xf = x_nchw.astype(jnp.float32)

    # Training-mode BatchNorm batch stats (biased variance), one pass over x,
    # pivot-shifted so E[d^2]-E[d]^2 does not cancel when |mean| >> std.
    pivot = xf[:1, :, :1, :1]                              # (1, C, 1, 1)
    d = xf - pivot
    mean_d = jnp.mean(d, axis=(0, 2, 3))
    var = jnp.maximum(jnp.mean(d * d, axis=(0, 2, 3)) - mean_d * mean_d, 0.0)
    mean = pivot.reshape(C) + mean_d
    scale = gamma.astype(jnp.float32) / jnp.sqrt(var + eps)
    shift = beta.astype(jnp.float32) - mean * scale
    # TODO(synk): running_mean / running_var buffers are not updated here.

    # Stage activations for the kernel: even/odd pool rows -> NHWC -> flat bf16.
    # Each is one strided-slice + transpose + cast copy (fused by XLA); together
    # they read x once and write x-size in bf16.
    def stage(rows):                                        # rows: (N, C, Hh, W)
        t = jnp.transpose(rows, (0, 2, 3, 1))               # (N, Hh, W, C)
        return t.reshape(M, C2).astype(jnp.bfloat16)        # lanes = (w-parity, c)

    xe = stage(xf[:, :, 0::2, :])
    xo = stage(xf[:, :, 1::2, :])
    # TODO(synk): with NHWC activations end-to-end these staging copies vanish.

    tm = _pick_row_tile(M, C2, CoutP)
    Mp = _round_up(M, tm)
    if Mp != M:  # pad rows instead of demanding tm be an exact divisor of M
        xe = jnp.pad(xe, ((0, Mp - M), (0, 0)))
        xo = jnp.pad(xo, ((0, Mp - M), (0, 0)))

    # Per-(w-parity, channel) BN affine params.
    scale2 = jnp.tile(scale, 2).reshape(1, C2)
    shift2 = jnp.tile(shift, 2).reshape(1, C2)

    # 1x1-conv weight -> (2C, CoutP) bf16: row duplication sums the w-pair, the
    # 0.25 pool average is folded in, zero-pad makes Cout lane-dense (x128).
    w2d = conv_w.reshape(Cout, C).T.astype(jnp.float32)     # (C, Cout)
    w2 = jnp.concatenate([w2d, w2d], axis=0) * 0.25         # (2C, Cout)
    w2 = jnp.pad(w2, ((0, 0), (0, CoutP - Cout))).astype(jnp.bfloat16)

    grid = (Mp // tm,)
    out_flat = pl.pallas_call(
        transition_kernel,
        out_shape=jax.ShapeDtypeStruct((Mp, CoutP), jnp.float32),
        grid_spec=pltpu.PrefetchScalarGridSpec(
            num_scalar_prefetch=0,
            grid=grid,
            in_specs=[
                pl.BlockSpec((tm, C2), lambda i: (i, 0)),
                pl.BlockSpec((tm, C2), lambda i: (i, 0)),
                pl.BlockSpec((1, C2), lambda i: (0, 0)),
                pl.BlockSpec((1, C2), lambda i: (0, 0)),
                # TODO(synk): pipeline_mode=pl.Buffered(1) would drop the second
                # buffer of this constant weight block (v7x VMEM saving).
                pl.BlockSpec((C2, CoutP), lambda i: (0, 0)),
            ],
            out_specs=pl.BlockSpec((tm, CoutP), lambda i: (i, 0)),
        ),
        compiler_params=pltpu.CompilerParams(
            dimension_semantics=("parallel",),
            vmem_limit_bytes=_VMEM_LIMIT,
        ),
    )(xe, xo, scale2, shift2, w2)

    out = out_flat[:M, :Cout].reshape(N, Hh, Wh, Cout)
    # TODO(synk): drop this transpose (and emit bf16) if the consumer accepts
    # NHWC / bf16 activations.
    return jnp.transpose(out, (0, 3, 1, 2)).astype(x_nchw.dtype)


def transition_reference(x_nchw, gamma, beta, conv_w, eps=1e-5):
    # Pure-JAX reference mirroring the PyTorch forward (training-mode BN, f32).
    N, C, H, W = x_nchw.shape
    Cout = conv_w.shape[0]
    mean = jnp.mean(x_nchw, axis=(0, 2, 3))
    var = jnp.mean((x_nchw - mean[None, :, None, None]) ** 2, axis=(0, 2, 3))
    xn = (x_nchw - mean[None, :, None, None]) / jnp.sqrt(var + eps)[None, :, None, None]
    y = jnp.maximum(gamma[None, :, None, None] * xn + beta[None, :, None, None], 0.0)
    conv = jnp.einsum("nchw,oc->nohw", y, conv_w.reshape(Cout, C))
    pooled = conv.reshape(N, Cout, H // 2, 2, W // 2, 2).mean(axis=(3, 5))
    return pooled


if __name__ == "__main__":
    # Small shapes consistent with the module: nChannels=8, nOutChannels=4.
    N, C, H, W = 2, 8, 16, 16
    Cout = 4

    key = jax.random.PRNGKey(0)
    kx, kg, kb, kw = jax.random.split(key, 4)
    x = jax.random.normal(kx, (N, C, H, W), dtype=jnp.float32)
    gamma = 1.0 + 0.1 * jax.random.normal(kg, (C,), dtype=jnp.float32)
    beta = 0.1 * jax.random.normal(kb, (C,), dtype=jnp.float32)
    conv_w = jax.random.normal(kw, (Cout, C, 1, 1), dtype=jnp.float32) * (2.0 / C) ** 0.5

    fwd = jax.jit(transition_forward)
    out = fwd(x, gamma, beta, conv_w)
    jax.block_until_ready(out)

    ref = transition_reference(x, gamma, beta, conv_w)
    assert out.shape == (N, Cout, H // 2, W // 2)
    # bf16 activation/weight staging => bf16-level tolerance vs the f32 reference.
    assert jnp.allclose(out, ref, atol=5e-2, rtol=5e-2), float(jnp.max(jnp.abs(out - ref)))

    print("KERNEL_OK")
</pallas_src>

<mosaic_0001>
module attributes {stable_mosaic.version = 11 : i64} {
  func.func @transition_kernel(%arg0: i32, %arg1: memref<32x16xbf16, #tpu.memory_space<vmem>>, %arg2: memref<32x16xbf16, #tpu.memory_space<vmem>>, %arg3: memref<1x16xf32, #tpu.memory_space<vmem>>, %arg4: memref<1x16xf32, #tpu.memory_space<vmem>>, %arg5: memref<16x128xbf16, #tpu.memory_space<vmem>>, %arg6: memref<32x128xf32, #tpu.memory_space<vmem>>) attributes {dimension_semantics = [#tpu.dimension_semantics<parallel>], iteration_bounds = array<i64: 4>, scalar_prefetch = 0 : i64, scratch_operands = 0 : i64, tpu.core_type = #tpu.core_type<tc>, window_params = [{transform_indices = @transform_0, window_bounds = array<i64: 32, 16>}, {transform_indices = @transform_1, window_bounds = array<i64: 32, 16>}, {pipeline_mode = #tpu.pipeline_mode<synchronous>, transform_indices = @transform_2, window_bounds = array<i64: 1, 16>}, {pipeline_mode = #tpu.pipeline_mode<synchronous>, transform_indices = @transform_3, window_bounds = array<i64: 1, 16>}, {pipeline_mode = #tpu.pipeline_mode<synchronous>, transform_indices = @transform_4, window_bounds = array<i64: 16, 128>}, {transform_indices = @transform_5, window_bounds = array<i64: 32, 128>}]} {
    %c0 = arith.constant 0 : index
    %c0_0 = arith.constant 0 : index
    %0 = vector.load %arg3[%c0, %c0_0] : memref<1x16xf32, #tpu.memory_space<vmem>>, vector<1x16xf32>
    %c0_1 = arith.constant 0 : index
    %c0_2 = arith.constant 0 : index
    %1 = vector.load %arg4[%c0_1, %c0_2] : memref<1x16xf32, #tpu.memory_space<vmem>>, vector<1x16xf32>
    %c0_3 = arith.constant 0 : index
    %c0_4 = arith.constant 0 : index
    %2 = vector.load %arg1[%c0_3, %c0_4] : memref<32x16xbf16, #tpu.memory_space<vmem>>, vector<32x16xbf16>
    %3 = arith.extf %2 : vector<32x16xbf16> to vector<32x16xf32>
    %c0_5 = arith.constant 0 : index
    %c0_6 = arith.constant 0 : index
    %4 = vector.load %arg2[%c0_5, %c0_6] : memref<32x16xbf16, #tpu.memory_space<vmem>>, vector<32x16xbf16>
    %5 = arith.extf %4 : vector<32x16xbf16> to vector<32x16xf32>
    %6 = vector.broadcast %0 : vector<1x16xf32> to vector<32x16xf32>
    %7 = arith.mulf %3, %6 : vector<32x16xf32>
    %8 = vector.broadcast %1 : vector<1x16xf32> to vector<32x16xf32>
    %9 = arith.addf %7, %8 : vector<32x16xf32>
    %cst = arith.constant 0.000000e+00 : f32
    %10 = vector.broadcast %cst : f32 to vector<32x16xf32>
    %11 = arith.maximumf %9, %10 : vector<32x16xf32>
    %12 = vector.broadcast %0 : vector<1x16xf32> to vector<32x16xf32>
    %13 = arith.mulf %5, %12 : vector<32x16xf32>
    %14 = vector.broadcast %1 : vector<1x16xf32> to vector<32x16xf32>
    %15 = arith.addf %13, %14 : vector<32x16xf32>
    %cst_7 = arith.constant 0.000000e+00 : f32
    %16 = vector.broadcast %cst_7 : f32 to vector<32x16xf32>
    %17 = arith.maximumf %15, %16 : vector<32x16xf32>
    %18 = arith.addf %11, %17 : vector<32x16xf32>
    %19 = arith.truncf %18 : vector<32x16xf32> to vector<32x16xbf16>
    %c0_8 = arith.constant 0 : index
    %c0_9 = arith.constant 0 : index
    %20 = vector.load %arg5[%c0_8, %c0_9] : memref<16x128xbf16, #tpu.memory_space<vmem>>, vector<16x128xbf16>
    %cst_10 = arith.constant dense<0.000000e+00> : vector<32x128xf32>
    %21 = tpu.matmul %19, %20, %cst_10 {dimension_numbers = #tpu.dot_dimension_numbers<[1], [0], [0], [1], [0, 0, 1, 1], [], []>} : vector<32x16xbf16>, vector<16x128xbf16>, vector<32x128xf32> -> vector<32x128xf32>
    %c0_11 = arith.constant 0 : index
    %c0_12 = arith.constant 0 : index
    %22 = vector.load %arg6[%c0_11, %c0_12] : memref<32x128xf32, #tpu.memory_space<vmem>>, vector<32x128xf32>
    tpu.vector_store %arg6[%c0_11, %c0_12], %21 {strides = array<i32>} : memref<32x128xf32, #tpu.memory_space<vmem>>, vector<32x128xf32>,
    return
  }
  func.func @transform_0(%arg0: i32) -> (i32, i32) {
    %c0_i32 = arith.constant 0 : i32
    %c0_i32_0 = arith.constant 0 : i32
    return %arg0, %c0_i32 : i32, i32
  }
  func.func @transform_1(%arg0: i32) -> (i32, i32) {
    %c0_i32 = arith.constant 0 : i32
    %c0_i32_0 = arith.constant 0 : i32
    return %arg0, %c0_i32 : i32, i32
  }
  func.func @transform_2(%arg0: i32) -> (i32, i32) {
    %c0_i32 = arith.constant 0 : i32
    %c0_i32_0 = arith.constant 0 : i32
    %c0_i32_1 = arith.constant 0 : i32
    return %c0_i32, %c0_i32_0 : i32, i32
  }
  func.func @transform_3(%arg0: i32) -> (i32, i32) {
    %c0_i32 = arith.constant 0 : i32
    %c0_i32_0 = arith.constant 0 : i32
    %c0_i32_1 = arith.constant 0 : i32
    return %c0_i32, %c0_i32_0 : i32, i32
  }
  func.func @transform_4(%arg0: i32) -> (i32, i32) {
    %c0_i32 = arith.constant 0 : i32
    %c0_i32_0 = arith.constant 0 : i32
    %c0_i32_1 = arith.constant 0 : i32
    return %c0_i32, %c0_i32_0 : i32, i32
  }
  func.func @transform_5(%arg0: i32) -> (i32, i32) {
    %c0_i32 = arith.constant 0 : i32
    %c0_i32_0 = arith.constant 0 : i32
    return %arg0, %c0_i32 : i32, i32
  }
}

</mosaic_0001>

<llo_original>
// kernel: tile.18
$region0: #{tile.18}
  #allocation0 [shape = 's32[1]{0}', space=sflag, size = 0x4, scoped, tag = 'scoped memory for tile.18']
  %s0 = inlined_call_operand.vmem [shape: f32[8], index: 0, kind: input, shape index: {}]
  %s1 = inlined_call_operand.vmem [shape: f32[2,8], index: 1, kind: output, shape index: {}]
  // Predicated region
  $region2: #{tile.18} parent=0 // pred_check
    _
  $region3: #{tile.18} parent=0 // pred_check_branch
    %3 = sbr.rel (0) target = $region5
  $region4: #{tile.18} parent=0 // pred_region
    _
  $region5: #{tile.18} parent=0 // pred_fallthru
    _
  %v4 = vld [vmem:[%s0] ss:$0 sm:$0xff]
  %5 = vst [vmem:[%s1] sm:$0x3] %v4

// kernel: tile.19
$region0: #{tile.19}
  %s0 = inlined_call_operand.vmem [shape: f32[2,8], index: 0, kind: input, shape index: {}]
  %s1 = inlined_call_operand.vmem [shape: f32[1,16], index: 1, kind: output, shape index: {}]
  $region1: #{tile.19} parent=0
    #allocation0 [shape = 'u8[4096]{0}', space=vmem, size = 0x1000, scoped, tag = 'scoped mem for output reshape']
    #allocation1 [shape = 'u8[4096]{0}', space=vmem, size = 0x1000, scoped, tag = 'scoped mem for input reshape']
    %s3 = ssub.s32 4, 1
    %v4 = vld [vmem:[%s0] sm:%s3]
    %5 = vst [vmem:[#allocation1] sm:%s3] %v4
    %v6 = vld [vmem:[#allocation1] sm:$0x1]
    %vm7 = vcmask 64512
    %8 = vst.msk [vmem:[#allocation0] sm:$0x1] %vm7, %v6
    %s9 = scalar_lea.vmem [#allocation1], 1
    %v10 = vld [vmem:[%s9] sm:$0x1]
    %11 = vrot.lane.b32.xlu0 %v10, 8
    %v12 = vpop.permute.xlu0 %11
    %vm13 = vcmask 130112
    %14 = vst.msk [vmem:[#allocation0] sm:$0x1] %vm13, %v12
    %s16 = ssub.s32 2, 1
    %v17 = vld [vmem:[#allocation0] sm:%s16]
    %s19 = ssub.s32 2, 1
    %20 = vst [vmem:[%s1] sm:%s19] %v17

// kernel: transition_forward.1
$region0: #{transition_forward.1}
  #allocation0 [shape = 'u32[]', space=smem, size = 0x4, offset = 0x4, fixed_abs, tag = 'smem constant byte address 0x4 - core index']
  #allocation1 [shape = 'u32[72,128]{1,0:T(1,128)}', space=vmem, size = 0x9000, scoped, tag = 'internal scratch']
  %s0 = inlined_call_operand.vmem [shape: bf16[128,16], index: 0, kind: input, shape index: {}]
  %s1 = inlined_call_operand.vmem [shape: bf16[128,16], index: 1, kind: input, shape index: {}]
  %s2 = inlined_call_operand.vmem [shape: f32[1,16], index: 2, kind: input, shape index: {}]
  %s3 = inlined_call_operand.vmem [shape: f32[1,16], index: 3, kind: input, shape index: {}]
  %s4 = inlined_call_operand.vmem [shape: bf16[16,128], index: 4, kind: input, shape index: {}]
  %s5 = inlined_call_operand.vmem [shape: f32[128,128], index: 5, kind: output, shape index: {}]
  %s6 = sld [smem:[#allocation0]]
  $region53: #{transition_forward.1} parent=0
    _
  %s8 = ssub.s32 1, %s6
  %s9 = scalar_select 0, %s8, %s6
  loop: start=0, step=1, limit=6
  $region2: #{transition_forward.1} parent=0 // loop_pre_header
    _
  $region3: #{transition_forward.1} parent=0 // loop_header
    %s11 = sphi 0, %s15
    %p12 = scmp.ge.s32.totalorder %s11, 6
    %s21 = sphi 0, %s23
    %s24 = sphi 0, %s21
    %s25 = sphi 0, %s24
    %s41 = sphi 0, %s25
    %s47 = sphi 0, %s49
    %s50 = sphi 0, %s47
    %s51 = sphi 0, %s50
    %s67 = sphi 0, %s51
    %s71 = sphi 0, %s71
    %s73 = sphi 0, %s71
    %s74 = sphi 0, %s73
    %s88 = sphi 0, %s74
    %s92 = sphi 0, %s92
    %s94 = sphi 0, %s92
    %s95 = sphi 0, %s94
    %s109 = sphi 0, %s95
    %s113 = sphi 0, %s113
    %s115 = sphi 0, %s113
    %s116 = sphi 0, %s115
    %s130 = sphi 0, %s116
    %s136 = sphi 0, %s138
    %s139 = sphi 0, %s136
    %s140 = sphi 0, %s139
    %s156 = sphi 0, %s140
  $region4: #{transition_forward.1} parent=0 // loop_header_branch
    %14 = sbr.rel (%p12) target = $region8
  $region5: #{transition_forward.1} parent=0 // loop_body
    %s16 = ssub.s32 %s11, 1
    %s17 = ssub.s32 %s11, 2
    %s18 = sadd.s32 %s11, 1
    %s19 = ssub.s32 %s11, %s18
    %p20 = scmp.eq.s32.totalorder %s19, 0
    %s22 = sadd.s32 %s21, 1
    %s23 = scalar_select %p20, %s21, %s22
    %p26 = pneg %p20
    %p27 = scmp.eq.s32.totalorder %s11, 3
    %p28 = por %p26, %p27
    %p29 = scmp.ne.s32.totalorder %s21, %s24
    %p30 = scmp.eq.s32.totalorder %s11, 0
    %p31 = por %p29, %p30
    %p32 = scmp.ne.s32.totalorder %s21, %s24
    %p33 = scmp.eq.s32.totalorder %s16, 3
    %p34 = por %p32, %p33
    %p35 = scmp.ne.s32.totalorder %s24, %s25
    %p36 = scmp.eq.s32.totalorder %s16, 0
    %p37 = por %p35, %p36
    %p38 = scmp.ne.s32.totalorder %s24, %s25
    %p39 = scmp.eq.s32.totalorder %s17, 3
    %p40 = por %p38, %p39
    %p42 = scmp.ne.s32.totalorder %s25, %s41
    %p43 = scmp.eq.s32.totalorder %s17, 0
    %p44 = por %p42, %p43
    %s45 = ssub.s32 %s11, %s18
    %p46 = scmp.eq.s32.totalorder %s45, 0
    %s48 = sadd.s32 %s47, 1
    %s49 = scalar_select %p46, %s47, %s48
    %p52 = pneg %p46
    %p53 = scmp.eq.s32.totalorder %s11, 3
    %p54 = por %p52, %p53
    %p55 = scmp.ne.s32.totalorder %s47, %s50
    %p56 = scmp.eq.s32.totalorder %s11, 0
    %p57 = por %p55, %p56
    %p58 = scmp.ne.s32.totalorder %s47, %s50
    %p59 = scmp.eq.s32.totalorder %s16, 3
    %p60 = por %p58, %p59
    %p61 = scmp.ne.s32.totalorder %s50, %s51
    %p62 = scmp.eq.s32.totalorder %s16, 0
    %p63 = por %p61, %p62
    %p64 = scmp.ne.s32.totalorder %s50, %s51
    %p65 = scmp.eq.s32.totalorder %s17, 3
    %p66 = por %p64, %p65
    %p68 = scmp.ne.s32.totalorder %s51, %s67
    %p69 = scmp.eq.s32.totalorder %s17, 0
    %p70 = por %p68, %p69
    %s72 = sadd.s32 %s71, 1
    %p75 = scmp.eq.s32.totalorder %s11, 3
    %p76 = scmp.ne.s32.totalorder %s71, %s73
    %p77 = scmp.eq.s32.totalorder %s11, 0
    %p78 = por %p76, %p77
    %p79 = scmp.ne.s32.totalorder %s71, %s73
    %p80 = scmp.eq.s32.totalorder %s16, 3
    %p81 = por %p79, %p80
    %p82 = scmp.ne.s32.totalorder %s73, %s74
    %p83 = scmp.eq.s32.totalorder %s16, 0
    %p84 = por %p82, %p83
    %p85 = scmp.ne.s32.totalorder %s73, %s74
    %p86 = scmp.eq.s32.totalorder %s17, 3
    %p87 = por %p85, %p86
    %p89 = scmp.ne.s32.totalorder %s74, %s88
    %p90 = scmp.eq.s32.totalorder %s17, 0
    %p91 = por %p89, %p90
    %s93 = sadd.s32 %s92, 1
    %p96 = scmp.eq.s32.totalorder %s11, 3
    %p97 = scmp.ne.s32.totalorder %s92, %s94
    %p98 = scmp.eq.s32.totalorder %s11, 0
    %p99 = por %p97, %p98
    %p100 = scmp.ne.s32.totalorder %s92, %s94
    %p101 = scmp.eq.s32.totalorder %s16, 3
    %p102 = por %p100, %p101
    %p103 = scmp.ne.s32.totalorder %s94, %s95
    %p104 = scmp.eq.s32.totalorder %s16, 0
    %p105 = por %p103, %p104
    %p106 = scmp.ne.s32.totalorder %s94, %s95
    %p107 = scmp.eq.s32.totalorder %s17, 3
    %p108 = por %p106, %p107
    %p110 = scmp.ne.s32.totalorder %s95, %s109
    %p111 = scmp.eq.s32.totalorder %s17, 0
    %p112 = por %p110, %p111
    %s114 = sadd.s32 %s113, 1
    %p117 = scmp.eq.s32.totalorder %s11, 3
    %p118 = scmp.ne.s32.totalorder %s113, %s115
    %p119 = scmp.eq.s32.totalorder %s11, 0
    %p120 = por %p118, %p119
    %p121 = scmp.ne.s32.totalorder %s113, %s115
    %p122 = scmp.eq.s32.totalorder %s16, 3
    %p123 = por %p121, %p122
    %p124 = scmp.ne.s32.totalorder %s115, %s116
    %p125 = scmp.eq.s32.totalorder %s16, 0
    %p126 = por %p124, %p125
    %p127 = scmp.ne.s32.totalorder %s115, %s116
    %p128 = scmp.eq.s32.totalorder %s17, 3
    %p129 = por %p127, %p128
    %p131 = scmp.ne.s32.totalorder %s116, %s130
    %p132 = scmp.eq.s32.totalorder %s17, 0
    %p133 = por %p131, %p132
    %s134 = ssub.s32 %s11, %s18
    %p135 = scmp.eq.s32.totalorder %s134, 0
    %s137 = sadd.s32 %s136, 1
    %s138 = scalar_select %p135, %s136, %s137
    %p141 = pneg %p135
    %p142 = scmp.eq.s32.totalorder %s11, 3
    %p143 = por %p141, %p142
    %p144 = scmp.ne.s32.totalorder %s136, %s139
    %p145 = scmp.eq.s32.totalorder %s11, 0
    %p146 = por %p144, %p145
    %p147 = scmp.ne.s32.totalorder %s136, %s139
    %p148 = scmp.eq.s32.totalorder %s16, 3
    %p149 = por %p147, %p148
    %p150 = scmp.ne.s32.totalorder %s139, %s140
    %p151 = scmp.eq.s32.totalorder %s16, 0
    %p152 = por %p150, %p151
    %p153 = scmp.ne.s32.totalorder %s139, %s140
    %p154 = scmp.eq.s32.totalorder %s17, 3
    %p155 = por %p153, %p154
    %p157 = scmp.ne.s32.totalorder %s140, %s156
    %p158 = scmp.eq.s32.totalorder %s17, 0
    %p159 = por %p157, %p158
    %p160 = scmp.le.s32.totalorder 1, %s11
    %p161 = scmp.lt.s32.totalorder %s11, 5
    %p162 = pnand %p160, %p161
    %p163 = pneg %p162
    // Predicated region
    $region9: #{transition_forward.1} parent=5 // pred_check
      _
    $region10: #{transition_forward.1} parent=5 // pred_check_branch
      %165 = sbr.rel (%p162) target = $region12
    $region11: #{transition_forward.1} parent=5 // pred_region
      %s166 = ssub.s32 %s11, 1
      // Predicated region
      $region13: #{transition_forward.1} parent=11 // pred_check
        %p167 = pneg %p84
      $region14: #{transition_forward.1} parent=11 // pred_check_branch
        %169 = sbr.rel (%p167) target = $region16
      $region15: #{transition_forward.1} parent=11 // pred_region
        _
      $region16: #{transition_forward.1} parent=11 // pred_fallthru
        _
      // Predicated region
      $region17: #{transition_forward.1} parent=11 // pred_check
        %p170 = pneg %p105
      $region18: #{transition_forward.1} parent=11 // pred_check_branch
        %172 = sbr.rel (%p170) target = $region20
      $region19: #{transition_forward.1} parent=11 // pred_region
        _
      $region20: #{transition_forward.1} parent=11 // pred_fallthru
        _
      // Predicated region
      $region21: #{transition_forward.1} parent=11 // pred_check
        %p173 = pneg %p126
      $region22: #{transition_forward.1} parent=11 // pred_check_branch
        %175 = sbr.rel (%p173) target = $region24
      $region23: #{transition_forward.1} parent=11 // pred_region
        _
      $region24: #{transition_forward.1} parent=11 // pred_fallthru
        _
    $region12: #{transition_forward.1} parent=5 // pred_fallthru
      _
    %p176 = scmp.lt.s32.totalorder %s11, 4
    // Predicated region
    $region25: #{transition_forward.1} parent=5 // pred_check
      %p177 = pneg %p176
    $region26: #{transition_forward.1} parent=5 // pred_check_branch
      %179 = sbr.rel (%p177) target = $region28
    $region27: #{transition_forward.1} parent=5 // pred_region
      // Predicated region
      $region29: #{transition_forward.1} parent=27 // pred_check
        %p180 = pneg %p31
      $region30: #{transition_forward.1} parent=27 // pred_check_branch
        %182 = sbr.rel (%p180) target = $region32
      $region31: #{transition_forward.1} parent=27 // pred_region
        %s183 = smul.u32 4, %s11
        %p184 = scmp.lt.s32.totalorder %s183, 15
        %s185 = scalar_select %p184, %s183, 15
        %s186 = smul.addr %s185, 4
        %s187 = scalar_lea.vmem %s0, %s186
        %s188 = smul.u32 4, %s11
      $region32: #{transition_forward.1} parent=27 // pred_fallthru
        _
      // Predicated region
      $region33: #{transition_forward.1} parent=27 // pred_check
        %p189 = pneg %p57
      $region34: #{transition_forward.1} parent=27 // pred_check_branch
        %191 = sbr.rel (%p189) target = $region36
      $region35: #{transition_forward.1} parent=27 // pred_region
        %s192 = smul.u32 4, %s11
        %p193 = scmp.lt.s32.totalorder %s192, 15
        %s194 = scalar_select %p193, %s192, 15
        %s195 = smul.addr %s194, 4
        %s196 = scalar_lea.vmem %s1, %s195
        %s197 = smul.u32 4, %s11
      $region36: #{transition_forward.1} parent=27 // pred_fallthru
        _
    $region28: #{transition_forward.1} parent=5 // pred_fallthru
      _
    %p198 = scmp.le.s32.totalorder 1, %s11
    %p199 = scmp.lt.s32.totalorder %s11, 5
    %p200 = pnand %p198, %p199
    %p201 = pneg %p200
    // Predicated region
    $region37: #{transition_forward.1} parent=5 // pred_check
      _
    $region38: #{transition_forward.1} parent=5 // pred_check_branch
      %203 = sbr.rel (%p200) target = $region40
    $region39: #{transition_forward.1} parent=5 // pred_region
      %s204 = ssub.s32 %s11, 1
      %s205 = smul.u32 4, %s16
      %p206 = scmp.lt.s32.totalorder %s205, 15
      %s207 = scalar_select %p206, %s205, 15
      %s208 = smul.addr %s207, 4
      %s209 = scalar_lea.vmem %s0, %s208
      %p210 = pneg %p37
      %p211 = pneg %p34
      %s212 = smul.u32 4, %s16
      %p213 = scmp.lt.s32.totalorder %s212, 15
      %s214 = scalar_select %p213, %s212, 15
      %s215 = smul.addr %s214, 4
      %s216 = scalar_lea.vmem %s1, %s215
      %p217 = pneg %p63
      %p218 = pneg %p60
      %p219 = pneg %p84
      %p220 = pneg %p81
      %p221 = pneg %p105
      %p222 = pneg %p102
      %p223 = pneg %p126
      %p224 = pneg %p123
      %p225 = pneg %p152
      %p226 = pneg %p149
      %s227 = smul.u32 4, %s16
      %p228 = scmp.lt.s32.totalorder %s227, 15
      %s229 = scalar_select %p228, %s227, 15
      %s230 = smul.addr %s229, 8
      %s231 = scalar_lea.vmem %s5, %s230
      %s232 = smul.u32 4, %s16
      %p233 = scmp.lt.s32.totalorder %s232, 15
      %s234 = scalar_select %p233, %s232, 15
      %s235 = smul.addr %s234, 4
      %s236 = scalar_lea.vmem %s0, %s235
      %s237 = smul.u32 4, %s16
      %s238 = smul.u32 4, %s16
      %p239 = scmp.lt.s32.totalorder %s238, 15
      %s240 = scalar_select %p239, %s238, 15
      %s241 = smul.addr %s240, 4
      %s242 = scalar_lea.vmem %s1, %s241
      %s243 = smul.u32 4, %s16
      %s244 = smul.u32 4, %s16
      %p245 = scmp.lt.s32.totalorder %s244, 15
      %s246 = scalar_select %p245, %s244, 15
      %s247 = smul.addr %s246, 8
      %s248 = scalar_lea.vmem %s5, %s247
      %s249 = smul.u32 4, %s16
      %v251 = vld [vmem:[%s2] sm:$0x1]
      %v252 = vld [vmem:[%s3] sm:$0x1]
      %v253 = vld [vmem:[%s236] sm:$0xf]
      %v254 = vld [vmem:[%s236 + $0x4] sm:$0xf]
      %v255 = vld [vmem:[%s236 + $0x8] sm:$0xf]
      %v256 = vld [vmem:[%s236 + $0xc] sm:$0xf]
      %v257 = vunpack.c.l.bf16 %v253
      %v258 = vunpack.c.l.bf16 %v254
      %v259 = vunpack.c.l.bf16 %v255
      %v260 = vunpack.c.l.bf16 %v256
      %v261 = vld [vmem:[%s242] sm:$0xf]
      %v262 = vld [vmem:[%s242 + $0x4] sm:$0xf]
      %v263 = vld [vmem:[%s242 + $0x8] sm:$0xf]
      %v264 = vld [vmem:[%s242 + $0xc] sm:$0xf]
      %v265 = vunpack.c.l.bf16 %v261
      %v266 = vunpack.c.l.bf16 %v262
      %v267 = vunpack.c.l.bf16 %v263
      %v268 = vunpack.c.l.bf16 %v264
      %v270 = vperm.slane %v251, 0
      %v272 = vmul.f32 %v257, %v270
      %v273 = vmul.f32 %v258, %v270
      %v274 = vmul.f32 %v259, %v270
      %v275 = vmul.f32 %v260, %v270
      %v277 = vperm.slane %v252, 0
      %v279 = vadd.f32 %v272, %v277
      %v280 = vadd.f32 %v273, %v277
      %v281 = vadd.f32 %v274, %v277
      %v282 = vadd.f32 %v275, %v277
      %v283 = vmax.f32 %v279, 0.0
      %v284 = vmax.f32 %v280, 0.0
      %v285 = vmax.f32 %v281, 0.0
      %v286 = vmax.f32 %v282, 0.0
      %v287 = vmul.f32 %v265, %v270
      %v288 = vmul.f32 %v266, %v270
      %v289 = vmul.f32 %v267, %v270
      %v290 = vmul.f32 %v268, %v270
      %v291 = vadd.f32 %v287, %v277
      %v292 = vadd.f32 %v288, %v277
      %v293 = vadd.f32 %v289, %v277
      %v294 = vadd.f32 %v290, %v277
      %v295 = vmax.f32 %v291, 0.0
      %v296 = vmax.f32 %v292, 0.0
      %v297 = vmax.f32 %v293, 0.0
      %v298 = vmax.f32 %v294, 0.0
      %v299 = vadd.f32 %v283, %v295
      %v300 = vadd.f32 %v284, %v296
      %v301 = vadd.f32 %v285, %v297
      %v302 = vadd.f32 %v286, %v298
      %v303 = vpack.c.bf16 %v300, %v299
      %v304 = vpack.c.bf16 %v302, %v301
      %v305 = vld [vmem:[%s4] sm:$0xf]
      %v306 = vld [vmem:[%s4 + $0x4] sm:$0xf]
      %v309 = vunpack.c.l.b16 %v305
      %v310 = vunpack.c.l.b16 %v306
      %v311 = vpack.c.b16 %v310, %v309
      %vm313 = vcmask 130048
      %v315 = vsel %vm313, %v303, 0
      %v318 = vsel %vm313, %v304, 0
      %320 = vmatpush.bf16.msra.mxu0 0
      %321 = vmatpush.bf16.msra.mxu0 0
      %322 = vmatpush.bf16.msra.mxu0 0
      %323 = vmatpush.bf16.msra.mxu0 0
      %324 = vmatpush.bf16.msra.mxu0 0
      %325 = vmatpush.bf16.msra.mxu0 0
      %326 = vmatpush.bf16.msra.mxu0 0
      %327 = vmatpush.bf16.msra.mxu0 %v311
      %328 = vmatmul.bf16.gmra.mxu0 %v315
      %v329 = vpop.f32.mrf.mxu0
      %v330 = vadd.f32 0.0, %v329
      %v331 = vpop.f32.mrf.mxu0
      %v332 = vadd.f32 0.0, %v331
      %333 = vmatmul.bf16.gmra.mxu0 %v318
      %v334 = vpop.f32.mrf.mxu0
      %v335 = vadd.f32 0.0, %v334
      %v336 = vpop.f32.mrf.mxu0
      %v337 = vadd.f32 0.0, %v336
      %338 = vdwg.mxu0
      %339 = vst [vmem:[%s248] sm:$0xff] %v330
      %340 = vst [vmem:[%s248 + $0x8] sm:$0xff] %v332
      %341 = vst [vmem:[%s248 + $0x10] sm:$0xff] %v335
      %342 = vst [vmem:[%s248 + $0x18] sm:$0xff] %v337
      %s343 = smul.u32 4, %s16
      %p344 = scmp.lt.s32.totalorder %s343, 15
      %s345 = scalar_select %p344, %s343, 15
      %s346 = smul.addr %s345, 8
      %s347 = scalar_lea.vmem %s5, %s346
      // Predicated region
      $region41: #{transition_forward.1} parent=39 // pred_check
        %p348 = pneg %p149
      $region42: #{transition_forward.1} parent=39 // pred_check_branch
        %350 = sbr.rel (%p348) target = $region44
      $region43: #{transition_forward.1} parent=39 // pred_region
        %s351 = smul.u32 4, %s16
      $region44: #{transition_forward.1} parent=39 // pred_fallthru
        _
    $region40: #{transition_forward.1} parent=5 // pred_fallthru
      _
    %p352 = scmp.le.s32.totalorder 2, %s11
    // Predicated region
    $region45: #{transition_forward.1} parent=5 // pred_check
      %p353 = pneg %p352
    $region46: #{transition_forward.1} parent=5 // pred_check_branch
      %355 = sbr.rel (%p353) target = $region48
    $region47: #{transition_forward.1} parent=5 // pred_region
      %s356 = ssub.s32 %s11, 2
      // Predicated region
      $region49: #{transition_forward.1} parent=47 // pred_check
        %p357 = pneg %p155
      $region50: #{transition_forward.1} parent=47 // pred_check_branch
        %359 = sbr.rel (%p357) target = $region52
      $region51: #{transition_forward.1} parent=47 // pred_region
        %s360 = smul.u32 4, %s17
        %p361 = scmp.lt.s32.totalorder %s360, 15
        %s362 = scalar_select %p361, %s360, 15
        %s363 = smul.addr %s362, 8
        %s364 = scalar_lea.vmem %s5, %s363
      $region52: #{transition_forward.1} parent=47 // pred_fallthru
        _
    $region48: #{transition_forward.1} parent=5 // pred_fallthru
      _
  $region6: #{transition_forward.1} parent=0 // loop_footer
    %s15 = sadd.s32 1, %s11
  $region7: #{transition_forward.1} parent=0 // loop_footer_branch
    %10 = sbr.rel target = $region3
  $region8: #{transition_forward.1} parent=0 // loop_exit
    _

</llo_original>
